<compile_context>
chip_gen: v7x
topology: tpu7x:2x2x1
jax: 0.10.0
libtpu: 0.0.40
codegen_flags: <defaults>
</compile_context>

<pallas_src>
import jax
import jax.numpy as jnp
from jax import lax
from jax.experimental import pallas as pl
from jax.experimental.pallas import tpu as pltpu

# ImageNet normalization constants (ResNet50_torch / InceptionV3_torch branch)
_MEAN = (0.485, 0.456, 0.406)
_STD = (0.229, 0.224, 0.225)
_LANES = 128


# ----------------------------------------------------------------------------
# Kernel 1: fused quantize + (resize==identity) + folded-normalize +
#           1x1 conv (MXU) + ReLU + global-average-pool accumulation.
# Grid: (N, num_hw_chunks); chunk axis is a reduction with a VMEM accumulator.
# ----------------------------------------------------------------------------
def _make_features_kernel(hw, hw_chunk, quantize):
    inv_hw = 1.0 / float(hw)
    # Lane-friendly accumulator width: fold lane-groups of 128 when possible.
    acc_w = _LANES if hw_chunk % _LANES == 0 else hw_chunk
    groups = hw_chunk // acc_w
    needs_mask = (hw % hw_chunk) != 0

    def kernel(x_ref, w1_ref, b1_ref, rep_ref, acc_ref):
        j = pl.program_id(1)

        @pl.when(j == 0)
        def _init():
            acc_ref[...] = jnp.zeros_like(acc_ref)

        x = x_ref[0]                                       # (C, hw_chunk) f32
        if quantize:
            # quantize_images: [-1,1] -> uint8 pixel values (kept in f32)
            y = jnp.floor(jnp.clip(127.5 * (x + 1.0) + 0.5, 0.0, 255.0))
        else:
            # TODO(synk): numpy's uint8 cast wraps negatives mod 256; clamped here.
            y = jnp.floor(jnp.clip(x, 0.0, 255.0))

        # Folded 1x1 conv on the MXU: (F, C) @ (C, hw_chunk) -> (F, hw_chunk)
        h = jnp.dot(w1_ref[...], y, preferred_element_type=jnp.float32)
        h = jnp.maximum(h + b1_ref[...], 0.0)              # bias + ReLU (VPU)

        if needs_mask:
            # Masked ragged tail chunk: zero contributions past HW.
            pos = j * hw_chunk + lax.broadcasted_iota(jnp.int32, h.shape, 1)
            h = jnp.where(pos < hw, h, 0.0)

        # Partial pooling: fold lane-groups into the (F, acc_w) accumulator
        # with pure VPU adds (static, lane-aligned slices -> no relayout).
        acc = acc_ref[...]
        for g in range(groups):
            acc = acc + h[:, g * acc_w:(g + 1) * acc_w]
        acc_ref[...] = acc

        @pl.when(j == pl.num_programs(1) - 1)
        def _finalize():
            # Single cross-lane reduce, once per image, as a tiny trans-B MXU
            # dot: (1, acc_w) . (F, acc_w)^T -> lane-dense (1, F) row.
            ones_row = jnp.ones((1, acc_w), jnp.float32)
            pooled = lax.dot_general(
                ones_row, acc_ref[...],
                dimension_numbers=(((1,), (1,)), ((), ())),
                preferred_element_type=jnp.float32)        # (1, F)
            rep_ref[0] = pooled * inv_hw

    return kernel, acc_w


def _pick_hw_chunk(hw, target=8192):
    """Pixel-chunk size: a single block if hw is small (block dim == full dim is
    always layout-legal), else the largest multiple of 128 <= target (the ragged
    tail chunk is masked inside the kernel)."""
    if hw <= target:
        return hw
    return max(_LANES, (target // _LANES) * _LANES)


def extract_features(x, w1_folded, b1_folded, *, quantize=True, hw_chunk=None):
    """x: (N, C, H, W) f32 in [-1,1] -> pooled features 'repres' (N, F) f32."""
    n, c, h, w = x.shape
    hw = h * w
    f = w1_folded.shape[0]
    if hw_chunk is None:
        hw_chunk = _pick_hw_chunk(hw)
    assert hw_chunk == hw or hw_chunk % _LANES == 0, \
        "hw_chunk must be a multiple of 128 lanes (or equal H*W)"
    num_chunks = pl.cdiv(hw, hw_chunk)
    x_flat = x.reshape(n, c, hw)                           # contiguous, no transpose

    kernel, acc_w = _make_features_kernel(hw, hw_chunk, quantize)
    rep3 = pl.pallas_call(
        kernel,
        out_shape=jax.ShapeDtypeStruct((n, 1, f), jnp.float32),
        grid_spec=pltpu.PrefetchScalarGridSpec(
            num_scalar_prefetch=0,
            grid=(n, num_chunks),
            in_specs=[
                pl.BlockSpec((1, c, hw_chunk), lambda i, j: (i, 0, j)),
                pl.BlockSpec((f, c), lambda i, j: (0, 0)),
                pl.BlockSpec((f, 1), lambda i, j: (0, 0)),
            ],
            out_specs=pl.BlockSpec((1, 1, f), lambda i, j: (i, 0, 0)),
            scratch_shapes=[pltpu.VMEM((f, acc_w), jnp.float32)],
        ),
        compiler_params=pltpu.CompilerParams(
            dimension_semantics=("parallel", "arbitrary"),
            vmem_limit_bytes=32 * 1024 * 1024),
    )(x_flat, w1_folded, b1_folded)
    return rep3.reshape(n, f)


# ----------------------------------------------------------------------------
# Kernel 2: fc head, batched over the whole batch: logits = repres @ W2 + b2
# ----------------------------------------------------------------------------
def _fc_kernel(rep_ref, w2_ref, b2_ref, logits_ref):
    logits_ref[...] = (
        jnp.dot(rep_ref[...], w2_ref[...], preferred_element_type=jnp.float32)
        + b2_ref[...])


def fc_head(repres, w2, b2):
    """repres: (N, F) -> logits (N, K) in one batched MXU matmul."""
    n, f = repres.shape
    k = w2.shape[1]
    return pl.pallas_call(
        _fc_kernel,
        out_shape=jax.ShapeDtypeStruct((n, k), jnp.float32),
        grid_spec=pltpu.PrefetchScalarGridSpec(
            num_scalar_prefetch=0,
            grid=(1,),
            in_specs=[
                pl.BlockSpec((n, f), lambda i: (0, 0)),
                pl.BlockSpec((f, k), lambda i: (0, 0)),
                pl.BlockSpec((1, k), lambda i: (0, 0)),
            ],
            out_specs=pl.BlockSpec((n, k), lambda i: (0, 0)),
        ),
        compiler_params=pltpu.CompilerParams(
            dimension_semantics=("arbitrary",)),
    )(repres, w2, b2.reshape(1, k))


# ----------------------------------------------------------------------------
# Extractor wrapper (get_outputs)
# ----------------------------------------------------------------------------
class ExtractorPallas:
    def __init__(self, feat_dim=128, num_classes=128, in_ch=3, seed=0,
                 hw_chunk=None):
        assert in_ch == 3, "ImageNet mean/std normalization requires 3 channels"
        k1, k2, k3, k4 = jax.random.split(jax.random.PRNGKey(seed), 4)
        # Deterministic synthetic "pretrained" weights.
        self.w1 = (jax.random.normal(k1, (in_ch, feat_dim), jnp.float32)
                   * (1.0 / jnp.sqrt(in_ch)))
        self.b1 = jax.random.normal(k2, (feat_dim,), jnp.float32) * 0.01
        self.w2 = (jax.random.normal(k3, (feat_dim, num_classes), jnp.float32)
                   * (1.0 / jnp.sqrt(feat_dim)))
        self.b2 = jax.random.normal(k4, (num_classes,), jnp.float32) * 0.01
        self.hw_chunk = hw_chunk

        mean = jnp.array(_MEAN, jnp.float32).reshape(in_ch, 1)
        std = jnp.array(_STD, jnp.float32).reshape(in_ch, 1)
        # Fold (y/255 - mean)/std into the first layer:
        #   W1^T((y/255 - mean)/std) + b1
        #     = (W1/(255*std))^T y + (b1 - W1^T (mean/std))
        self.w1_folded = (self.w1 / (255.0 * std)).T                   # (F, C)
        self.b1_folded = (self.b1
                          - jnp.sum(self.w1 * (mean / std), axis=0)
                          ).reshape(feat_dim, 1)                        # (F, 1)

    def __call__(self, x, quantize=True):
        repres = extract_features(x, self.w1_folded, self.b1_folded,
                                  quantize=quantize, hw_chunk=self.hw_chunk)
        logits = fc_head(repres, self.w2, self.b2)
        return repres, logits


# ----------------------------------------------------------------------------
# Pure-JAX reference of the same forward (unfused) for correctness checking.
# ----------------------------------------------------------------------------
def _reference(x, w1, b1, w2, b2, quantize=True):
    if quantize:
        y = jnp.floor(jnp.clip(127.5 * (x + 1.0) + 0.5, 0.0, 255.0))
    else:
        y = jnp.floor(jnp.clip(x, 0.0, 255.0))
    mean = jnp.array(_MEAN, jnp.float32).reshape(1, 3, 1, 1)
    std = jnp.array(_STD, jnp.float32).reshape(1, 3, 1, 1)
    xn = (y / 255.0 - mean) / std
    h = jnp.einsum('nchw,cf->nfhw', xn, w1) + b1.reshape(1, -1, 1, 1)
    h = jnp.maximum(h, 0.0)
    rep = h.mean(axis=(2, 3))
    logits = rep @ w2 + b2
    return rep, logits


if __name__ == "__main__":
    key = jax.random.PRNGKey(0)
    # Small synthetic images in [-1,1], NCHW, 3 channels (RGB required by the
    # ImageNet mean/std), spatial 16x16 (== self.res for this synthetic
    # backbone, so the resizer is identity).
    x = jax.random.uniform(key, (2, 3, 16, 16), jnp.float32,
                           minval=-1.0, maxval=1.0)

    # hw_chunk=128 so the demo exercises the chunked pooling accumulator
    # (HW = 256 -> 2 chunks per image).
    extractor = ExtractorPallas(feat_dim=128, num_classes=128, in_ch=3, seed=0,
                                hw_chunk=128)
    repres, logits = extractor(x, quantize=True)
    jax.block_until_ready((repres, logits))

    # Shape/dtype contract: (features-before-fc, fc-output).
    assert repres.shape == (2, 128) and logits.shape == (2, 128)
    assert repres.dtype == jnp.float32 and logits.dtype == jnp.float32

    # Numerical check against the unfused pure-JAX reference.
    rep_ref, log_ref = _reference(x, extractor.w1, extractor.b1,
                                  extractor.w2, extractor.b2, quantize=True)
    assert jnp.allclose(repres, rep_ref, rtol=1e-4, atol=1e-3)
    assert jnp.allclose(logits, log_ref, rtol=1e-4, atol=1e-3)

    # Ragged-HW path: 12x12 -> HW=144, hw_chunk=128 -> 2 chunks, masked tail.
    x2 = jax.random.uniform(jax.random.PRNGKey(1), (2, 3, 12, 12), jnp.float32,
                            minval=-1.0, maxval=1.0)
    rep2, log2 = extractor(x2, quantize=True)
    jax.block_until_ready((rep2, log2))
    rep2_ref, log2_ref = _reference(x2, extractor.w1, extractor.b1,
                                    extractor.w2, extractor.b2, quantize=True)
    assert jnp.allclose(rep2, rep2_ref, rtol=1e-4, atol=1e-3)
    assert jnp.allclose(log2, log2_ref, rtol=1e-4, atol=1e-3)

    print("KERNEL_OK")
</pallas_src>

<mosaic_0001>
module attributes {stable_mosaic.version = 11 : i64} {
  func.func @kernel(%arg0: i32, %arg1: i32, %arg2: memref<1x3x128xf32, #tpu.memory_space<vmem>>, %arg3: memref<128x3xf32, #tpu.memory_space<vmem>>, %arg4: memref<128x1xf32, #tpu.memory_space<vmem>>, %arg5: memref<1x1x128xf32, #tpu.memory_space<vmem>>, %arg6: memref<128x128xf32, #tpu.memory_space<vmem>>) attributes {dimension_semantics = [#tpu.dimension_semantics<parallel>, #tpu.dimension_semantics<arbitrary>], iteration_bounds = array<i64: 2, 2>, scalar_prefetch = 0 : i64, scratch_operands = 1 : i64, tpu.core_type = #tpu.core_type<tc>, window_params = [{transform_indices = @transform_0, window_bounds = array<i64: 1, 3, 128>}, {pipeline_mode = #tpu.pipeline_mode<synchronous>, transform_indices = @transform_1, window_bounds = array<i64: 128, 3>}, {pipeline_mode = #tpu.pipeline_mode<synchronous>, transform_indices = @transform_2, window_bounds = array<i64: 128, 1>}, {transform_indices = @transform_3, window_bounds = array<i64: 1, 1, 128>}]} {
    %c0_i32 = arith.constant 0 : i32
    %0 = arith.cmpi eq, %arg1, %c0_i32 : i32
    %1 = arith.extui %0 : i1 to i32
    %c0_i32_0 = arith.constant 0 : i32
    %2 = arith.cmpi ne, %1, %c0_i32_0 : i32
    scf.if %2 {
      %cst_18 = arith.constant 0.000000e+00 : f32
      %29 = vector.broadcast %cst_18 : f32 to vector<128x128xf32>
      %c0_19 = arith.constant 0 : index
      %c0_20 = arith.constant 0 : index
      %30 = vector.load %arg6[%c0_19, %c0_20] : memref<128x128xf32, #tpu.memory_space<vmem>>, vector<128x128xf32>
      tpu.vector_store %arg6[%c0_19, %c0_20], %29 {strides = array<i32>} : memref<128x128xf32, #tpu.memory_space<vmem>>, vector<128x128xf32>,
    } else {
    }
    %c0 = arith.constant 0 : index
    %c0_1 = arith.constant 0 : index
    %c0_2 = arith.constant 0 : index
    %3 = vector.load %arg2[%c0, %c0_1, %c0_2] : memref<1x3x128xf32, #tpu.memory_space<vmem>>, vector<1x3x128xf32>
    %4 = vector.shape_cast %3 : vector<1x3x128xf32> to vector<3x128xf32>
    %cst = arith.constant 1.000000e+00 : f32
    %5 = vector.broadcast %cst : f32 to vector<3x128xf32>
    %6 = arith.addf %4, %5 : vector<3x128xf32>
    %cst_3 = arith.constant 1.275000e+02 : f32
    %7 = vector.broadcast %cst_3 : f32 to vector<3x128xf32>
    %8 = arith.mulf %7, %6 : vector<3x128xf32>
    %cst_4 = arith.constant 5.000000e-01 : f32
    %9 = vector.broadcast %cst_4 : f32 to vector<3x128xf32>
    %10 = arith.addf %8, %9 : vector<3x128xf32>
    %cst_5 = arith.constant 0.000000e+00 : f32
    %cst_6 = arith.constant 2.550000e+02 : f32
    %11 = vector.broadcast %cst_5 : f32 to vector<3x128xf32>
    %12 = arith.maximumf %11, %10 : vector<3x128xf32>
    %13 = vector.broadcast %cst_6 : f32 to vector<3x128xf32>
    %14 = arith.minimumf %13, %12 : vector<3x128xf32>
    %15 = math.floor %14 : vector<3x128xf32>
    %c0_7 = arith.constant 0 : index
    %c0_8 = arith.constant 0 : index
    %16 = vector.load %arg3[%c0_7, %c0_8] : memref<128x3xf32, #tpu.memory_space<vmem>>, vector<128x3xf32>
    %cst_9 = arith.constant dense<0.000000e+00> : vector<128x128xf32>
    %17 = tpu.matmul %16, %15, %cst_9 {dimension_numbers = #tpu.dot_dimension_numbers<[1], [0], [0], [1], [0, 0, 1, 1], [], []>} : vector<128x3xf32>, vector<3x128xf32>, vector<128x128xf32> -> vector<128x128xf32>
    %c0_10 = arith.constant 0 : index
    %c0_11 = arith.constant 0 : index
    %18 = vector.load %arg4[%c0_10, %c0_11] : memref<128x1xf32, #tpu.memory_space<vmem>>, vector<128x1xf32>
    %19 = vector.broadcast %18 : vector<128x1xf32> to vector<128x128xf32>
    %20 = arith.addf %17, %19 : vector<128x128xf32>
    %cst_12 = arith.constant 0.000000e+00 : f32
    %21 = vector.broadcast %cst_12 : f32 to vector<128x128xf32>
    %22 = arith.maximumf %20, %21 : vector<128x128xf32>
    %c0_13 = arith.constant 0 : index
    %c0_14 = arith.constant 0 : index
    %23 = vector.load %arg6[%c0_13, %c0_14] : memref<128x128xf32, #tpu.memory_space<vmem>>, vector<128x128xf32>
    %24 = arith.addf %23, %22 : vector<128x128xf32>
    %c0_15 = arith.constant 0 : index
    %c0_16 = arith.constant 0 : index
    %25 = vector.load %arg6[%c0_15, %c0_16] : memref<128x128xf32, #tpu.memory_space<vmem>>, vector<128x128xf32>
    tpu.vector_store %arg6[%c0_15, %c0_16], %24 {strides = array<i32>} : memref<128x128xf32, #tpu.memory_space<vmem>>, vector<128x128xf32>,
    %c1_i32 = arith.constant 1 : i32
    %26 = arith.cmpi eq, %arg1, %c1_i32 : i32
    %27 = arith.extui %26 : i1 to i32
    %c0_i32_17 = arith.constant 0 : i32
    %28 = arith.cmpi ne, %27, %c0_i32_17 : i32
    scf.if %28 {
      %cst_18 = arith.constant 1.000000e+00 : f32
      %29 = vector.broadcast %cst_18 : f32 to vector<1x128xf32>
      %c0_19 = arith.constant 0 : index
      %c0_20 = arith.constant 0 : index
      %30 = vector.load %arg6[%c0_19, %c0_20] : memref<128x128xf32, #tpu.memory_space<vmem>>, vector<128x128xf32>
      %cst_21 = arith.constant dense<0.000000e+00> : vector<1x128xf32>
      %31 = tpu.matmul %29, %30, %cst_21 {dimension_numbers = #tpu.dot_dimension_numbers<[1], [1], [0], [0], [0, 0, 1, 0], [], []>} : vector<1x128xf32>, vector<128x128xf32>, vector<1x128xf32> -> vector<1x128xf32>
      %cst_22 = arith.constant 3.906250e-03 : f32
      %32 = vector.broadcast %cst_22 : f32 to vector<1x128xf32>
      %33 = arith.mulf %31, %32 : vector<1x128xf32>
      %c0_23 = arith.constant 0 : index
      %c0_24 = arith.constant 0 : index
      %c0_25 = arith.constant 0 : index
      %34 = vector.load %arg5[%c0_23, %c0_24, %c0_25] : memref<1x1x128xf32, #tpu.memory_space<vmem>>, vector<1x1x128xf32>
      %35 = vector.shape_cast %34 : vector<1x1x128xf32> to vector<1x128xf32>
      %36 = vector.shape_cast %33 : vector<1x128xf32> to vector<1x1x128xf32>
      tpu.vector_store %arg5[%c0_23, %c0_24, %c0_25], %36 {strides = array<i32>} : memref<1x1x128xf32, #tpu.memory_space<vmem>>, vector<1x1x128xf32>,
    } else {
    }
    return
  }
  func.func @transform_0(%arg0: i32, %arg1: i32) -> (i32, i32, i32) {
    %c0_i32 = arith.constant 0 : i32
    %c0_i32_0 = arith.constant 0 : i32
    return %arg0, %c0_i32, %arg1 : i32, i32, i32
  }
  func.func @transform_1(%arg0: i32, %arg1: i32) -> (i32, i32) {
    %c0_i32 = arith.constant 0 : i32
    %c0_i32_0 = arith.constant 0 : i32
    %c0_i32_1 = arith.constant 0 : i32
    return %c0_i32, %c0_i32_0 : i32, i32
  }
  func.func @transform_2(%arg0: i32, %arg1: i32) -> (i32, i32) {
    %c0_i32 = arith.constant 0 : i32
    %c0_i32_0 = arith.constant 0 : i32
    %c0_i32_1 = arith.constant 0 : i32
    return %c0_i32, %c0_i32_0 : i32, i32
  }
  func.func @transform_3(%arg0: i32, %arg1: i32) -> (i32, i32, i32) {
    %c0_i32 = arith.constant 0 : i32
    %c0_i32_0 = arith.constant 0 : i32
    %c0_i32_1 = arith.constant 0 : i32
    return %arg0, %c0_i32, %c0_i32_0 : i32, i32, i32
  }
}

</mosaic_0001>

<llo_original>
// kernel: tpu_custom_call.1
$region0: #{tpu_custom_call.1}
  #allocation0 [shape = 'u32[]', space=smem, size = 0x4, offset = 0x4, fixed_abs, tag = 'smem constant byte address 0x4 - core index']
  #allocation1 [shape = 'u32[144,128]{1,0:T(1,128)}', space=vmem, size = 0x12000, scoped, tag = 'internal scratch']
  #allocation2 [shape = 'f32[128,128]{1,0:T(8,128)}', space=vmem, size = 0x10000, scoped, tag = 'scratch operand']
  %s0 = inlined_call_operand.vmem [shape: f32[2,3,256], index: 0, kind: input, shape index: {}]
  %s1 = inlined_call_operand.vmem [shape: f32[128,3], index: 1, kind: input, shape index: {}]
  %s2 = inlined_call_operand.vmem [shape: f32[128,1], index: 2, kind: input, shape index: {}]
  %s3 = inlined_call_operand.hbm [shape: f32[2,1,128], index: 3, kind: output, shape index: {}]
  %s4 = sld [smem:[#allocation0]]
  $region53: #{tpu_custom_call.1} parent=0
    _
  %s6 = ssub.s32 1, %s4
  %s7 = scalar_select 0, %s6, %s4
  $region1: #{tpu_custom_call.1} parent=0
    #allocation3 [shape = 'u8[1024]{0}', space=vmem, size = 0x400, scoped, tag = 'output window, operand 0']
    #allocation4 [shape = 's32[2]{0}', space=sflag, size = 0x8, scoped, tag = 'scoped memory for tpu_custom_call.1']
    %8 = vsyncpa [#allocation4], 0
    %s9 = scalar_lea.sflag [#allocation4], 1
    %10 = vsyncpa %s9, 0
    loop: start=0, step=1, limit=6
    $region2: #{tpu_custom_call.1} parent=1 // loop_pre_header
      _
    $region3: #{tpu_custom_call.1} parent=1 // loop_header
      %s12 = sphi 0, %s16
      %p13 = scmp.ge.s32.totalorder %s12, 6
      %s19 = sphi 0, %s31
      %s20 = sphi 0, %s27
      %s21 = sphi 0, %s19
      %s22 = sphi 0, %s20
      %s23 = sphi 0, %s21
      %s24 = sphi 0, %s22
      %s36 = sphi 0, %s38
      %s39 = sphi 0, %s36
      %s40 = sphi 0, %s39
      %s56 = sphi 0, %s40
      %s60 = sphi 0, %s60
      %s62 = sphi 0, %s60
      %s63 = sphi 0, %s62
      %s77 = sphi 0, %s63
      %s81 = sphi 0, %s81
      %s83 = sphi 0, %s81
      %s84 = sphi 0, %s83
      %s98 = sphi 0, %s84
      %s104 = sphi 0, %s106
      %s107 = sphi 0, %s104
      %s108 = sphi 0, %s107
      %s124 = sphi 0, %s108
    $region4: #{tpu_custom_call.1} parent=1 // loop_header_branch
      %15 = sbr.rel (%p13) target = $region8
    $region5: #{tpu_custom_call.1} parent=1 // loop_body
      %s17 = ssub.s32 %s12, 1
      %s18 = ssub.s32 %s12, 2
      %s25 = sadd.s32 1, %s20
      %p26 = scmp.ge.s32.totalorder %s25, 2
      %s27 = scalar_select %p26, 0, %s25
      %s28 = sadd.s32 1, %s19
      %s29 = scalar_select %p26, %s28, %s19
      %p30 = scmp.ge.s32.totalorder %s29, 2
      %s31 = scalar_select %p30, 0, %s29
      %s32 = ssub.s32 %s19, %s31
      %s33 = ssub.s32 %s20, %s27
      %s34 = sor.u32 %s32, %s33
      %p35 = scmp.eq.s32.totalorder %s34, 0
      %s37 = sadd.s32 %s36, 1
      %s38 = scalar_select %p35, %s36, %s37
      %p41 = pneg %p35
      %p42 = scmp.eq.s32.totalorder %s12, 3
      %p43 = por %p41, %p42
      %p44 = scmp.ne.s32.totalorder %s36, %s39
      %p45 = scmp.eq.s32.totalorder %s12, 0
      %p46 = por %p44, %p45
      %p47 = scmp.ne.s32.totalorder %s36, %s39
      %p48 = scmp.eq.s32.totalorder %s17, 3
      %p49 = por %p47, %p48
      %p50 = scmp.ne.s32.totalorder %s39, %s40
      %p51 = scmp.eq.s32.totalorder %s17, 0
      %p52 = por %p50, %p51
      %p53 = scmp.ne.s32.totalorder %s39, %s40
      %p54 = scmp.eq.s32.totalorder %s18, 3
      %p55 = por %p53, %p54
      %p57 = scmp.ne.s32.totalorder %s40, %s56
      %p58 = scmp.eq.s32.totalorder %s18, 0
      %p59 = por %p57, %p58
      %s61 = sadd.s32 %s60, 1
      %p64 = scmp.eq.s32.totalorder %s12, 3
      %p65 = scmp.ne.s32.totalorder %s60, %s62
      %p66 = scmp.eq.s32.totalorder %s12, 0
      %p67 = por %p65, %p66
      %p68 = scmp.ne.s32.totalorder %s60, %s62
      %p69 = scmp.eq.s32.totalorder %s17, 3
      %p70 = por %p68, %p69
      %p71 = scmp.ne.s32.totalorder %s62, %s63
      %p72 = scmp.eq.s32.totalorder %s17, 0
      %p73 = por %p71, %p72
      %p74 = scmp.ne.s32.totalorder %s62, %s63
      %p75 = scmp.eq.s32.totalorder %s18, 3
      %p76 = por %p74, %p75
      %p78 = scmp.ne.s32.totalorder %s63, %s77
      %p79 = scmp.eq.s32.totalorder %s18, 0
      %p80 = por %p78, %p79
      %s82 = sadd.s32 %s81, 1
      %p85 = scmp.eq.s32.totalorder %s12, 3
      %p86 = scmp.ne.s32.totalorder %s81, %s83
      %p87 = scmp.eq.s32.totalorder %s12, 0
      %p88 = por %p86, %p87
      %p89 = scmp.ne.s32.totalorder %s81, %s83
      %p90 = scmp.eq.s32.totalorder %s17, 3
      %p91 = por %p89, %p90
      %p92 = scmp.ne.s32.totalorder %s83, %s84
      %p93 = scmp.eq.s32.totalorder %s17, 0
      %p94 = por %p92, %p93
      %p95 = scmp.ne.s32.totalorder %s83, %s84
      %p96 = scmp.eq.s32.totalorder %s18, 3
      %p97 = por %p95, %p96
      %p99 = scmp.ne.s32.totalorder %s84, %s98
      %p100 = scmp.eq.s32.totalorder %s18, 0
      %p101 = por %p99, %p100
      %s102 = ssub.s32 %s19, %s31
      %p103 = scmp.eq.s32.totalorder %s102, 0
      %s105 = sadd.s32 %s104, 1
      %s106 = scalar_select %p103, %s104, %s105
      %p109 = pneg %p103
      %p110 = scmp.eq.s32.totalorder %s12, 3
      %p111 = por %p109, %p110
      %p112 = scmp.ne.s32.totalorder %s104, %s107
      %p113 = scmp.eq.s32.totalorder %s12, 0
      %p114 = por %p112, %p113
      %p115 = scmp.ne.s32.totalorder %s104, %s107
      %p116 = scmp.eq.s32.totalorder %s17, 3
      %p117 = por %p115, %p116
      %p118 = scmp.ne.s32.totalorder %s107, %s108
      %p119 = scmp.eq.s32.totalorder %s17, 0
      %p120 = por %p118, %p119
      %p121 = scmp.ne.s32.totalorder %s107, %s108
      %p122 = scmp.eq.s32.totalorder %s18, 3
      %p123 = por %p121, %p122
      %p125 = scmp.ne.s32.totalorder %s108, %s124
      %p126 = scmp.eq.s32.totalorder %s18, 0
      %p127 = por %p125, %p126
      %p128 = scmp.le.s32.totalorder 1, %s12
      %p129 = scmp.lt.s32.totalorder %s12, 5
      %p130 = pnand %p128, %p129
      %p131 = pneg %p130
      // Predicated region
      $region9: #{tpu_custom_call.1} parent=5 // pred_check
        _
      $region10: #{tpu_custom_call.1} parent=5 // pred_check_branch
        %133 = sbr.rel (%p130) target = $region12
      $region11: #{tpu_custom_call.1} parent=5 // pred_region
        %s134 = ssub.s32 %s12, 1
        // Predicated region
        $region13: #{tpu_custom_call.1} parent=11 // pred_check
          %p135 = pneg %p73
        $region14: #{tpu_custom_call.1} parent=11 // pred_check_branch
          %137 = sbr.rel (%p135) target = $region16
        $region15: #{tpu_custom_call.1} parent=11 // pred_region
          _
        $region16: #{tpu_custom_call.1} parent=11 // pred_fallthru
          _
        // Predicated region
        $region17: #{tpu_custom_call.1} parent=11 // pred_check
          %p138 = pneg %p94
        $region18: #{tpu_custom_call.1} parent=11 // pred_check_branch
          %140 = sbr.rel (%p138) target = $region20
        $region19: #{tpu_custom_call.1} parent=11 // pred_region
          _
        $region20: #{tpu_custom_call.1} parent=11 // pred_fallthru
          _
      $region12: #{tpu_custom_call.1} parent=5 // pred_fallthru
        _
      %p141 = scmp.lt.s32.totalorder %s12, 4
      // Predicated region
      $region21: #{tpu_custom_call.1} parent=5 // pred_check
        %p142 = pneg %p141
      $region22: #{tpu_custom_call.1} parent=5 // pred_check_branch
        %144 = sbr.rel (%p142) target = $region24
      $region23: #{tpu_custom_call.1} parent=5 // pred_region
        // Predicated region
        $region25: #{tpu_custom_call.1} parent=23 // pred_check
          %p145 = pneg %p46
        $region26: #{tpu_custom_call.1} parent=23 // pred_check_branch
          %147 = sbr.rel (%p145) target = $region28
        $region27: #{tpu_custom_call.1} parent=23 // pred_region
          %p148 = scmp.lt.s32.totalorder %s19, 1
          %s149 = scalar_select %p148, %s19, 1
          %p150 = scmp.lt.s32.totalorder %s20, 1
          %s151 = scalar_select %p150, %s20, 1
          %s152 = smul.addr %s149, 2
          %s153 = sadd.s32 %s151, %s152
          %s154 = smul.addr %s153, 4
          %s155 = scalar_lea.vmem %s0, %s154
        $region28: #{tpu_custom_call.1} parent=23 // pred_fallthru
          _
      $region24: #{tpu_custom_call.1} parent=5 // pred_fallthru
        _
      %p156 = scmp.le.s32.totalorder 1, %s12
      %p157 = scmp.lt.s32.totalorder %s12, 5
      %p158 = pnand %p156, %p157
      %p159 = pneg %p158
      // Predicated region
      $region29: #{tpu_custom_call.1} parent=5 // pred_check
        _
      $region30: #{tpu_custom_call.1} parent=5 // pred_check_branch
        %161 = sbr.rel (%p158) target = $region32
      $region31: #{tpu_custom_call.1} parent=5 // pred_region
        %s162 = ssub.s32 %s12, 1
        %p163 = scmp.lt.s32.totalorder %s21, 1
        %s164 = scalar_select %p163, %s21, 1
        %p165 = scmp.lt.s32.totalorder %s22, 1
        %s166 = scalar_select %p165, %s22, 1
        %s167 = smul.addr %s164, 2
        %s168 = sadd.s32 %s166, %s167
        %s169 = smul.addr %s168, 4
        %s170 = scalar_lea.vmem %s0, %s169
        %p171 = pneg %p52
        %p172 = pneg %p49
        %p173 = pneg %p73
        %p174 = pneg %p70
        %p175 = pneg %p94
        %p176 = pneg %p91
        %p177 = pneg %p120
        %p178 = pneg %p117
        %s179 = sand.u32 %s107, 1
        %s180 = scalar_lea.sflag [#allocation4], %s179
        %s181 = sand.u32 %s107, 1
        %s182 = scalar_lea.vmem [#allocation3], %s181
        %p183 = scmp.lt.s32.totalorder %s21, 1
        %s184 = scalar_select %p183, %s21, 1
        %p185 = scmp.lt.s32.totalorder %s22, 1
        %s186 = scalar_select %p185, %s22, 1
        %s187 = smul.addr %s184, 2
        %s188 = sadd.s32 %s186, %s187
        %s189 = smul.addr %s188, 4
        %s190 = scalar_lea.vmem %s0, %s189
        %p191 = scmp.eq.s32.totalorder %s22, 0
        // Predicated region
        $region33: #{tpu_custom_call.1} parent=31 // pred_check
          %p192 = pneg %p191
        $region34: #{tpu_custom_call.1} parent=31 // pred_check_branch
          %194 = sbr.rel (%p192) target = $region36
        $region35: #{tpu_custom_call.1} parent=31 // pred_region
          %195 = vst [vmem:[#allocation2] sm:$0xff] 0.0
          %196 = vst [vmem:[#allocation2 + $0x8] sm:$0xff] 0.0
          %197 = vst [vmem:[#allocation2 + $0x10] sm:$0xff] 0.0
          %198 = vst [vmem:[#allocation2 + $0x18] sm:$0xff] 0.0
          %199 = vst [vmem:[#allocation2 + $0x20] sm:$0xff] 0.0
          %200 = vst [vmem:[#allocation2 + $0x28] sm:$0xff] 0.0
          %201 = vst [vmem:[#allocation2 + $0x30] sm:$0xff] 0.0
          %202 = vst [vmem:[#allocation2 + $0x38] sm:$0xff] 0.0
          %203 = vst [vmem:[#allocation2 + $0x40] sm:$0xff] 0.0
          %204 = vst [vmem:[#allocation2 + $0x48] sm:$0xff] 0.0
          %205 = vst [vmem:[#allocation2 + $0x50] sm:$0xff] 0.0
          %206 = vst [vmem:[#allocation2 + $0x58] sm:$0xff] 0.0
          %207 = vst [vmem:[#allocation2 + $0x60] sm:$0xff] 0.0
          %208 = vst [vmem:[#allocation2 + $0x68] sm:$0xff] 0.0
          %209 = vst [vmem:[#allocation2 + $0x70] sm:$0xff] 0.0
          %210 = vst [vmem:[#allocation2 + $0x78] sm:$0xff] 0.0
        $region36: #{tpu_custom_call.1} parent=31 // pred_fallthru
          _
        %v211 = vld [vmem:[%s190] sm:$0x7]
        %v212 = vadd.f32 %v211, 1.0
        %v213 = vmul.f32 %v212, 127.5
        %v214 = vadd.f32 %v213, 0.5
        %v215 = vmax.f32 %v214, 0.0
        %v216 = vmin.f32 %v215, 255.0
        %v217 = vfloor.f32 %v216
        %v218 = vld [vmem:[%s1] sm:$0xff]
        %v219 = vld [vmem:[%s1 + $0x8] sm:$0xff]
        %v220 = vld [vmem:[%s1 + $0x10] sm:$0xff]
        %v221 = vld [vmem:[%s1 + $0x18] sm:$0xff]
        %v222 = vld [vmem:[%s1 + $0x20] sm:$0xff]
        %v223 = vld [vmem:[%s1 + $0x28] sm:$0xff]
        %v224 = vld [vmem:[%s1 + $0x30] sm:$0xff]
        %v225 = vld [vmem:[%s1 + $0x38] sm:$0xff]
        %v226 = vld [vmem:[%s1 + $0x40] sm:$0xff]
        %v227 = vld [vmem:[%s1 + $0x48] sm:$0xff]
        %v228 = vld [vmem:[%s1 + $0x50] sm:$0xff]
        %v229 = vld [vmem:[%s1 + $0x58] sm:$0xff]
        %v230 = vld [vmem:[%s1 + $0x60] sm:$0xff]
        %v231 = vld [vmem:[%s1 + $0x68] sm:$0xff]
        %v232 = vld [vmem:[%s1 + $0x70] sm:$0xff]
        %v233 = vld [vmem:[%s1 + $0x78] sm:$0xff]
        %v234 = vld [vmem:[%s2] sm:$0xff]
        %v235 = vld [vmem:[%s2 + $0x8] sm:$0xff]
        %v236 = vld [vmem:[%s2 + $0x10] sm:$0xff]
        %v237 = vld [vmem:[%s2 + $0x18] sm:$0xff]
        %v238 = vld [vmem:[%s2 + $0x20] sm:$0xff]
        %v239 = vld [vmem:[%s2 + $0x28] sm:$0xff]
        %v240 = vld [vmem:[%s2 + $0x30] sm:$0xff]
        %v241 = vld [vmem:[%s2 + $0x38] sm:$0xff]
        %v242 = vld [vmem:[%s2 + $0x40] sm:$0xff]
        %v243 = vld [vmem:[%s2 + $0x48] sm:$0xff]
        %v244 = vld [vmem:[%s2 + $0x50] sm:$0xff]
        %v245 = vld [vmem:[%s2 + $0x58] sm:$0xff]
        %v246 = vld [vmem:[%s2 + $0x60] sm:$0xff]
        %v247 = vld [vmem:[%s2 + $0x68] sm:$0xff]
        %v248 = vld [vmem:[%s2 + $0x70] sm:$0xff]
        %v249 = vld [vmem:[%s2 + $0x78] sm:$0xff]
        %251 = vset.pattern.permute.xlu0 0
        %252 = vperm.xlu0 %251, %v234
        %v253 = vpop.permute.xlu0 %252
        %256 = vset.pattern.permute.xlu0 0
        %257 = vperm.xlu0 %256, %v235
        %v258 = vpop.permute.xlu0 %257
        %261 = vset.pattern.permute.xlu0 0
        %262 = vperm.xlu0 %261, %v236
        %v263 = vpop.permute.xlu0 %262
        %266 = vset.pattern.permute.xlu0 0
        %267 = vperm.xlu0 %266, %v237
        %v268 = vpop.permute.xlu0 %267
        %271 = vset.pattern.permute.xlu0 0
        %272 = vperm.xlu0 %271, %v238
        %v273 = vpop.permute.xlu0 %272
        %276 = vset.pattern.permute.xlu0 0
        %277 = vperm.xlu0 %276, %v239
        %v278 = vpop.permute.xlu0 %277
        %281 = vset.pattern.permute.xlu0 0
        %282 = vperm.xlu0 %281, %v240
        %v283 = vpop.permute.xlu0 %282
        %286 = vset.pattern.permute.xlu0 0
        %287 = vperm.xlu0 %286, %v241
        %v288 = vpop.permute.xlu0 %287
        %291 = vset.pattern.permute.xlu0 0
        %292 = vperm.xlu0 %291, %v242
        %v293 = vpop.permute.xlu0 %292
        %296 = vset.pattern.permute.xlu0 0
        %297 = vperm.xlu0 %296, %v243
        %v298 = vpop.permute.xlu0 %297
        %301 = vset.pattern.permute.xlu0 0
        %302 = vperm.xlu0 %301, %v244
        %v303 = vpop.permute.xlu0 %302
        %306 = vset.pattern.permute.xlu0 0
        %307 = vperm.xlu0 %306, %v245
        %v308 = vpop.permute.xlu0 %307
        %311 = vset.pattern.permute.xlu0 0
        %312 = vperm.xlu0 %311, %v246
        %v313 = vpop.permute.xlu0 %312
        %316 = vset.pattern.permute.xlu0 0
        %317 = vperm.xlu0 %316, %v247
        %v318 = vpop.permute.xlu0 %317
        %321 = vset.pattern.permute.xlu0 0
        %322 = vperm.xlu0 %321, %v248
        %v323 = vpop.permute.xlu0 %322
        %326 = vset.pattern.permute.xlu0 0
        %327 = vperm.xlu0 %326, %v249
        %v328 = vpop.permute.xlu0 %327
        %vm330 = vcmask 23552
        %v332 = vsel %vm330, %v218, 0
        %v335 = vsel %vm330, %v219, 0
        %v338 = vsel %vm330, %v220, 0
        %v341 = vsel %vm330, %v221, 0
        %v344 = vsel %vm330, %v222, 0
        %v347 = vsel %vm330, %v223, 0
        %v350 = vsel %vm330, %v224, 0
        %v353 = vsel %vm330, %v225, 0
        %v356 = vsel %vm330, %v226, 0
        %v359 = vsel %vm330, %v227, 0
        %v362 = vsel %vm330, %v228, 0
        %v365 = vsel %vm330, %v229, 0
        %v368 = vsel %vm330, %v230, 0
        %v371 = vsel %vm330, %v231, 0
        %v374 = vsel %vm330, %v232, 0
        %v377 = vsel %vm330, %v233, 0
        %vm379 = vcmask 1042432
        %v381 = vsel %vm379, %v217, 0
        %383 = vmatprep.subr.mxu0 0.0
        %384 = vmatpush1.msra.mxu0 %v381
        %385 = vmatprep.subr.mxu0 0.0
        %386 = vmatpush1.msra.mxu0 0.0
        %387 = vmatprep.subr.mxu0 0.0
        %388 = vmatpush1.msra.mxu0 0.0
        %389 = vmatprep.subr.mxu0 0.0
        %390 = vmatpush1.msra.mxu0 0.0
        %391 = vmatprep.subr.mxu0 0.0
        %392 = vmatpush1.msra.mxu0 0.0
        %393 = vmatprep.subr.mxu0 0.0
        %394 = vmatpush1.msra.mxu0 0.0
        %395 = vmatprep.subr.mxu0 0.0
        %396 = vmatpush1.msra.mxu0 0.0
        %397 = vmatprep.subr.mxu0 0.0
        %398 = vmatpush1.msra.mxu0 0.0
        %399 = vmatprep.subr.mxu0 0.0
        %400 = vmatpush1.msra.mxu0 0.0
        %401 = vmatprep.subr.mxu0 0.0
        %402 = vmatpush1.msra.mxu0 0.0
        %403 = vmatprep.subr.mxu0 0.0
        %404 = vmatpush1.msra.mxu0 0.0
        %405 = vmatprep.subr.mxu0 0.0
        %406 = vmatpush1.msra.mxu0 0.0
        %407 = vmatprep.subr.mxu0 0.0
        %408 = vmatpush1.msra.mxu0 0.0
        %409 = vmatprep.subr.mxu0 0.0
        %410 = vmatpush1.msra.mxu0 0.0
        %411 = vmatprep.subr.mxu0 0.0
        %412 = vmatpush1.msra.mxu0 0.0
        %413 = vmatprep.subr.mxu0 0.0
        %414 = vmatpush1.msra.mxu0 0.0
        %415 = vmatprep.subr.mxu0 0.0
        %416 = vmatpush1.msra.mxu0 0.0
        %417 = vmatprep.subr.mxu0 0.0
        %418 = vmatpush1.msra.mxu0 0.0
        %419 = vmatprep.subr.mxu0 0.0
        %420 = vmatpush1.msra.mxu0 0.0
        %421 = vmatprep.subr.mxu0 0.0
        %422 = vmatpush1.msra.mxu0 0.0
        %423 = vmatprep.subr.mxu0 0.0
        %424 = vmatpush1.msra.mxu0 0.0
        %425 = vmatprep.subr.mxu0 0.0
        %426 = vmatpush1.msra.mxu0 0.0
        %427 = vmatprep.subr.mxu0 0.0
        %428 = vmatpush1.msra.mxu0 0.0
        %429 = vmatprep.subr.mxu0 0.0
        %430 = vmatpush1.msra.mxu0 0.0
        %431 = vmatprep.subr.mxu0 0.0
        %432 = vmatpush1.msra.mxu0 0.0
        %433 = vmatprep.subr.mxu0 0.0
        %434 = vmatpush1.msra.mxu0 0.0
        %435 = vmatprep.subr.mxu0 0.0
        %436 = vmatpush1.msra.mxu0 0.0
        %437 = vmatprep.subr.mxu0 0.0
        %438 = vmatpush1.msra.mxu0 0.0
        %439 = vmatprep.subr.mxu0 0.0
        %440 = vmatpush1.msra.mxu0 0.0
        %441 = vmatprep.subr.mxu0 0.0
        %442 = vmatpush1.msra.mxu0 0.0
        %443 = vmatprep.subr.mxu0 0.0
        %444 = vmatpush1.msra.mxu0 0.0
        %445 = vmatprep.subr.mxu0 0.0
        %446 = vmatpush1.msra.mxu0 0.0
        %447 = vmatprep.mubr.f32.mxu0 0.0
        %448 = vmatmul.mubr.f32.gmra.mrb[0].mxu0 %v332
        %v449 = vpop.f32.mrb[0].mxu0
        %v450 = vadd.f32 %v253, %v449
        %v451 = vpop.f32.mrb[0].mxu0
        %452 = vmatprep.mubr.f32.mxu0 0.0
        %453 = vmatmul.mubr.f32.gmra.mrb[0].mxu0 %v335
        %v454 = vpop.f32.mrb[0].mxu0
        %v455 = vadd.f32 %v258, %v454
        %v456 = vpop.f32.mrb[0].mxu0
        %457 = vmatprep.mubr.f32.mxu0 0.0
        %458 = vmatmul.mubr.f32.gmra.mrb[0].mxu0 %v338
        %v459 = vpop.f32.mrb[0].mxu0
        %v460 = vadd.f32 %v263, %v459
        %v461 = vpop.f32.mrb[0].mxu0
        %462 = vmatprep.mubr.f32.mxu0 0.0
        %463 = vmatmul.mubr.f32.gmra.mrb[0].mxu0 %v341
        %v464 = vpop.f32.mrb[0].mxu0
        %v465 = vadd.f32 %v268, %v464
        %v466 = vpop.f32.mrb[0].mxu0
        %467 = vmatprep.mubr.f32.mxu0 0.0
        %468 = vmatmul.mubr.f32.gmra.mrb[0].mxu0 %v344
        %v469 = vpop.f32.mrb[0].mxu0
        %v470 = vadd.f32 %v273, %v469
        %v471 = vpop.f32.mrb[0].mxu0
        %472 = vmatprep.mubr.f32.mxu0 0.0
        %473 = vmatmul.mubr.f32.gmra.mrb[0].mxu0 %v347
        %v474 = vpop.f32.mrb[0].mxu0
        %v475 = vadd.f32 %v278, %v474
        %v476 = vpop.f32.mrb[0].mxu0
        %477 = vmatprep.mubr.f32.mxu0 0.0
        %478 = vmatmul.mubr.f32.gmra.mrb[0].mxu0 %v350
        %v479 = vpop.f32.mrb[0].mxu0
        %v480 = vadd.f32 %v283, %v479
        %v481 = vpop.f32.mrb[0].mxu0
        %482 = vmatprep.mubr.f32.mxu0 0.0
        %483 = vmatmul.mubr.f32.gmra.mrb[0].mxu0 %v353
        %v484 = vpop.f32.mrb[0].mxu0
        %v485 = vadd.f32 %v288, %v484
        %v486 = vpop.f32.mrb[0].mxu0
        %487 = vmatprep.mubr.f32.mxu0 0.0
        %488 = vmatmul.mubr.f32.gmra.mrb[0].mxu0 %v356
        %v489 = vpop.f32.mrb[0].mxu0
        %v490 = vadd.f32 %v293, %v489
        %v491 = vpop.f32.mrb[0].mxu0
        %492 = vmatprep.mubr.f32.mxu0 0.0
        %493 = vmatmul.mubr.f32.gmra.mrb[0].mxu0 %v359
        %v494 = vpop.f32.mrb[0].mxu0
        %v495 = vadd.f32 %v298, %v494
        %v496 = vpop.f32.mrb[0].mxu0
        %497 = vmatprep.mubr.f32.mxu0 0.0
        %498 = vmatmul.mubr.f32.gmra.mrb[0].mxu0 %v362
        %v499 = vpop.f32.mrb[0].mxu0
        %v500 = vadd.f32 %v303, %v499
        %v501 = vpop.f32.mrb[0].mxu0
        %502 = vmatprep.mubr.f32.mxu0 0.0
        %503 = vmatmul.mubr.f32.gmra.mrb[0].mxu0 %v365
        %v504 = vpop.f32.mrb[0].mxu0
        %v505 = vadd.f32 %v308, %v504
        %v506 = vpop.f32.mrb[0].mxu0
        %507 = vmatprep.mubr.f32.mxu0 0.0
        %508 = vmatmul.mubr.f32.gmra.mrb[0].mxu0 %v368
        %v509 = vpop.f32.mrb[0].mxu0
        %v510 = vadd.f32 %v313, %v509
        %v511 = vpop.f32.mrb[0].mxu0
        %512 = vmatprep.mubr.f32.mxu0 0.0
        %513 = vmatmul.mubr.f32.gmra.mrb[0].mxu0 %v371
        %v514 = vpop.f32.mrb[0].mxu0
        %v515 = vadd.f32 %v318, %v514
        %v516 = vpop.f32.mrb[0].mxu0
        %517 = vmatprep.mubr.f32.mxu0 0.0
        %518 = vmatmul.mubr.f32.gmra.mrb[0].mxu0 %v374
        %v519 = vpop.f32.mrb[0].mxu0
        %v520 = vadd.f32 %v323, %v519
        %v521 = vpop.f32.mrb[0].mxu0
        %522 = vmatprep.mubr.f32.mxu0 0.0
        %523 = vmatmul.mubr.f32.gmra.mrb[0].mxu0 %v377
        %v524 = vpop.f32.mrb[0].mxu0
        %v525 = vadd.f32 %v328, %v524
        %v526 = vpop.f32.mrb[0].mxu0
        %527 = vdwg.mxu0
        %v528 = vmax.f32 %v450, 0.0
        %v529 = vmax.f32 %v455, 0.0
        %v530 = vmax.f32 %v460, 0.0
        %v531 = vmax.f32 %v465, 0.0
        %v532 = vmax.f32 %v470, 0.0
        %v533 = vmax.f32 %v475, 0.0
        %v534 = vmax.f32 %v480, 0.0
        %v535 = vmax.f32 %v485, 0.0
        %v536 = vmax.f32 %v490, 0.0
        %v537 = vmax.f32 %v495, 0.0
        %v538 = vmax.f32 %v500, 0.0
        %v539 = vmax.f32 %v505, 0.0
        %v540 = vmax.f32 %v510, 0.0
        %v541 = vmax.f32 %v515, 0.0
        %v542 = vmax.f32 %v520, 0.0
        %v543 = vmax.f32 %v525, 0.0
        %v544 = vld [vmem:[#allocation2] sm:$0xff]
        %v545 = vld [vmem:[#allocation2 + $0x8] sm:$0xff]
        %v546 = vld [vmem:[#allocation2 + $0x10] sm:$0xff]
        %v547 = vld [vmem:[#allocation2 + $0x18] sm:$0xff]
        %v548 = vld [vmem:[#allocation2 + $0x20] sm:$0xff]
        %v549 = vld [vmem:[#allocation2 + $0x28] sm:$0xff]
        %v550 = vld [vmem:[#allocation2 + $0x30] sm:$0xff]
        %v551 = vld [vmem:[#allocation2 + $0x38] sm:$0xff]
        %v552 = vld [vmem:[#allocation2 + $0x40] sm:$0xff]
        %v553 = vld [vmem:[#allocation2 + $0x48] sm:$0xff]
        %v554 = vld [vmem:[#allocation2 + $0x50] sm:$0xff]
        %v555 = vld [vmem:[#allocation2 + $0x58] sm:$0xff]
        %v556 = vld [vmem:[#allocation2 + $0x60] sm:$0xff]
        %v557 = vld [vmem:[#allocation2 + $0x68] sm:$0xff]
        %v558 = vld [vmem:[#allocation2 + $0x70] sm:$0xff]
        %v559 = vld [vmem:[#allocation2 + $0x78] sm:$0xff]
        %v560 = vadd.f32 %v544, %v528
        %v561 = vadd.f32 %v545, %v529
        %v562 = vadd.f32 %v546, %v530
        %v563 = vadd.f32 %v547, %v531
        %v564 = vadd.f32 %v548, %v532
        %v565 = vadd.f32 %v549, %v533
        %v566 = vadd.f32 %v550, %v534
        %v567 = vadd.f32 %v551, %v535
        %v568 = vadd.f32 %v552, %v536
        %v569 = vadd.f32 %v553, %v537
        %v570 = vadd.f32 %v554, %v538
        %v571 = vadd.f32 %v555, %v539
        %v572 = vadd.f32 %v556, %v540
        %v573 = vadd.f32 %v557, %v541
        %v574 = vadd.f32 %v558, %v542
        %v575 = vadd.f32 %v559, %v543
        %576 = vst [vmem:[#allocation2] sm:$0xff] %v560
        %577 = vst [vmem:[#allocation2 + $0x8] sm:$0xff] %v561
        %578 = vst [vmem:[#allocation2 + $0x10] sm:$0xff] %v562
        %579 = vst [vmem:[#allocation2 + $0x18] sm:$0xff] %v563
        %580 = vst [vmem:[#allocation2 + $0x20] sm:$0xff] %v564
        %581 = vst [vmem:[#allocation2 + $0x28] sm:$0xff] %v565
        %582 = vst [vmem:[#allocation2 + $0x30] sm:$0xff] %v566
        %583 = vst [vmem:[#allocation2 + $0x38] sm:$0xff] %v567
        %584 = vst [vmem:[#allocation2 + $0x40] sm:$0xff] %v568
        %585 = vst [vmem:[#allocation2 + $0x48] sm:$0xff] %v569
        %586 = vst [vmem:[#allocation2 + $0x50] sm:$0xff] %v570
        %587 = vst [vmem:[#allocation2 + $0x58] sm:$0xff] %v571
        %588 = vst [vmem:[#allocation2 + $0x60] sm:$0xff] %v572
        %589 = vst [vmem:[#allocation2 + $0x68] sm:$0xff] %v573
        %590 = vst [vmem:[#allocation2 + $0x70] sm:$0xff] %v574
        %591 = vst [vmem:[#allocation2 + $0x78] sm:$0xff] %v575
        %p592 = scmp.eq.s32.totalorder %s22, 1
        // Predicated region
        $region37: #{tpu_custom_call.1} parent=31 // pred_check
          %p593 = pneg %p592
        $region38: #{tpu_custom_call.1} parent=31 // pred_check_branch
          %595 = sbr.rel (%p593) target = $region40
        $region39: #{tpu_custom_call.1} parent=31 // pred_region
          %v596 = vld [vmem:[#allocation2] sm:$0xff]
          %v597 = vld [vmem:[#allocation2 + $0x8] sm:$0xff]
          %v598 = vld [vmem:[#allocation2 + $0x10] sm:$0xff]
          %v599 = vld [vmem:[#allocation2 + $0x18] sm:$0xff]
          %v600 = vld [vmem:[#allocation2 + $0x20] sm:$0xff]
          %v601 = vld [vmem:[#allocation2 + $0x28] sm:$0xff]
          %v602 = vld [vmem:[#allocation2 + $0x30] sm:$0xff]
          %v603 = vld [vmem:[#allocation2 + $0x38] sm:$0xff]
          %v604 = vld [vmem:[#allocation2 + $0x40] sm:$0xff]
          %v605 = vld [vmem:[#allocation2 + $0x48] sm:$0xff]
          %v606 = vld [vmem:[#allocation2 + $0x50] sm:$0xff]
          %v607 = vld [vmem:[#allocation2 + $0x58] sm:$0xff]
          %v608 = vld [vmem:[#allocation2 + $0x60] sm:$0xff]
          %v609 = vld [vmem:[#allocation2 + $0x68] sm:$0xff]
          %v610 = vld [vmem:[#allocation2 + $0x70] sm:$0xff]
          %v611 = vld [vmem:[#allocation2 + $0x78] sm:$0xff]
          %612 = vmatprep.subr.mxu0 0.0
          %613 = vmatpush1.xpose.msra.mxu0 %v596
          %614 = vmatprep.subr.mxu0 0.0
          %615 = vmatpush1.xpose.msra.mxu0 %v597
          %616 = vmatprep.subr.mxu0 0.0
          %617 = vmatpush1.xpose.msra.mxu0 %v598
          %618 = vmatprep.subr.mxu0 0.0
          %619 = vmatpush1.xpose.msra.mxu0 %v599
          %620 = vmatprep.subr.mxu0 0.0
          %621 = vmatpush1.xpose.msra.mxu0 %v600
          %622 = vmatprep.subr.mxu0 0.0
          %623 = vmatpush1.xpose.msra.mxu0 %v601
          %624 = vmatprep.subr.mxu0 0.0
          %625 = vmatpush1.xpose.msra.mxu0 %v602
          %626 = vmatprep.subr.mxu0 0.0
          %627 = vmatpush1.xpose.msra.mxu0 %v603
          %628 = vmatprep.subr.mxu0 0.0
          %629 = vmatpush1.xpose.msra.mxu0 %v604
          %630 = vmatprep.subr.mxu0 0.0
          %631 = vmatpush1.xpose.msra.mxu0 %v605
          %632 = vmatprep.subr.mxu0 0.0
          %633 = vmatpush1.xpose.msra.mxu0 %v606
          %634 = vmatprep.subr.mxu0 0.0
          %635 = vmatpush1.xpose.msra.mxu0 %v607
          %636 = vmatprep.subr.mxu0 0.0
          %637 = vmatpush1.xpose.msra.mxu0 %v608
          %638 = vmatprep.subr.mxu0 0.0
          %639 = vmatpush1.xpose.msra.mxu0 %v609
          %640 = vmatprep.subr.mxu0 0.0
          %641 = vmatpush1.xpose.msra.mxu0 %v610
          %642 = vmatprep.subr.mxu0 0.0
          %643 = vmatpush1.xpose.msra.mxu0 %v611
          %644 = vmatprep.subr.mxu0 0.0
          %645 = vmatpush1.xpose.msra.mxu0 0.0
          %646 = vmatprep.subr.mxu0 0.0
          %647 = vmatpush1.xpose.msra.mxu0 0.0
          %648 = vmatprep.subr.mxu0 0.0
          %649 = vmatpush1.xpose.msra.mxu0 0.0
          %650 = vmatprep.subr.mxu0 0.0
          %651 = vmatpush1.xpose.msra.mxu0 0.0
          %652 = vmatprep.subr.mxu0 0.0
          %653 = vmatpush1.xpose.msra.mxu0 0.0
          %654 = vmatprep.subr.mxu0 0.0
          %655 = vmatpush1.xpose.msra.mxu0 0.0
          %656 = vmatprep.subr.mxu0 0.0
          %657 = vmatpush1.xpose.msra.mxu0 0.0
          %658 = vmatprep.subr.mxu0 0.0
          %659 = vmatpush1.xpose.msra.mxu0 0.0
          %660 = vmatprep.subr.mxu0 0.0
          %661 = vmatpush1.xpose.msra.mxu0 0.0
          %662 = vmatprep.subr.mxu0 0.0
          %663 = vmatpush1.xpose.msra.mxu0 0.0
          %664 = vmatprep.subr.mxu0 0.0
          %665 = vmatpush1.xpose.msra.mxu0 0.0
          %666 = vmatprep.subr.mxu0 0.0
          %667 = vmatpush1.xpose.msra.mxu0 0.0
          %668 = vmatprep.subr.mxu0 0.0
          %669 = vmatpush1.xpose.msra.mxu0 0.0
          %670 = vmatprep.subr.mxu0 0.0
          %671 = vmatpush1.xpose.msra.mxu0 0.0
          %672 = vmatprep.subr.mxu0 0.0
          %673 = vmatpush1.xpose.msra.mxu0 0.0
          %674 = vmatprep.subr.mxu0 0.0
          %675 = vmatpush1.xpose.msra.mxu0 0.0
          %676 = vmatprep.mubr.f32.mxu0 0.0
          %677 = vmatmul.mubr.f32.gmra.mrb[0].mxu0 1.0
          %v678 = vpop.f32.mrb[0].mxu0
          %v679 = vadd.f32 0.0, %v678
          %v680 = vpop.f32.mrb[0].mxu0
          %681 = vdwg.mxu0
          %v682 = vmul.f32 %v679, 0.00390625
          %683 = vst [vmem:[%s182] sm:$0x1] %v682
        $region40: #{tpu_custom_call.1} parent=31 // pred_fallthru
          _
        %s684 = sand.u32 %s107, 1
        %s685 = scalar_lea.sflag [#allocation4], %s684
        %s686 = sand.u32 %s107, 1
        %s687 = scalar_lea.vmem [#allocation3], %s686
        // Predicated region
        $region41: #{tpu_custom_call.1} parent=31 // pred_check
          %p688 = pneg %p117
        $region42: #{tpu_custom_call.1} parent=31 // pred_check_branch
          %690 = sbr.rel (%p688) target = $region44
        $region43: #{tpu_custom_call.1} parent=31 // pred_region
          %s692 = ssub.s32 16, 16
          %693 = vsyncadd %s685, %s692
          %s694 = smul.addr %s21, 16
          %s695 = scalar_lea.hbm %s3, %s694
          %s697 = sshll.u32 %s687, 4
          %s698 = int_to_ptr.vmem [resolvable:$true] %s697
          %700 = dma.vmem_to_hbm [thread:$0]  %s698, 16, %s695, %s685
        $region44: #{tpu_custom_call.1} parent=31 // pred_fallthru
          _
      $region32: #{tpu_custom_call.1} parent=5 // pred_fallthru
        _
      %p701 = scmp.le.s32.totalorder 2, %s12
      // Predicated region
      $region45: #{tpu_custom_call.1} parent=5 // pred_check
        %p702 = pneg %p701
      $region46: #{tpu_custom_call.1} parent=5 // pred_check_branch
        %704 = sbr.rel (%p702) target = $region48
      $region47: #{tpu_custom_call.1} parent=5 // pred_region
        %s705 = ssub.s32 %s12, 2
        // Predicated region
        $region49: #{tpu_custom_call.1} parent=47 // pred_check
          %p706 = pneg %p123
        $region50: #{tpu_custom_call.1} parent=47 // pred_check_branch
          %708 = sbr.rel (%p706) target = $region52
        $region51: #{tpu_custom_call.1} parent=47 // pred_region
          %s709 = sand.u32 %s108, 1
          %s710 = scalar_lea.sflag [#allocation4], %s709
          %s711 = sand.u32 %s108, 1
          %s712 = scalar_lea.vmem [#allocation3], %s711
          %713 = dma.done %s710, 16
        $region52: #{tpu_custom_call.1} parent=47 // pred_fallthru
          _
      $region48: #{tpu_custom_call.1} parent=5 // pred_fallthru
        _
    $region6: #{tpu_custom_call.1} parent=1 // loop_footer
      %s16 = sadd.s32 1, %s12
    $region7: #{tpu_custom_call.1} parent=1 // loop_footer_branch
      %11 = sbr.rel target = $region3
    $region8: #{tpu_custom_call.1} parent=1 // loop_exit
      _
    %714 = vsyncpa [#allocation4], 1
    %s715 = scalar_lea.sflag [#allocation4], 1
    %716 = vsyncpa %s715, 1

</llo_original>
